<compile_context>
chip_gen: v7x
topology: tpu7x:2x2x1
jax: 0.10.0
libtpu: 0.0.40
codegen_flags: <defaults>
</compile_context>

<pallas_src>
import numpy as np
import jax
import jax.numpy as jnp
from jax.experimental import pallas as pl
from jax.experimental.pallas import tpu as pltpu


def _actor_kernel(state_ref, w1_ref, b1_ref, w2_ref, b2_ref, w3_ref, b3_ref,
                  mean_ref):
    x = state_ref[...]                                                     # (TB, S)
    h1 = jnp.tanh(jnp.dot(x, w1_ref[...], preferred_element_type=jnp.float32)
                  + b1_ref[...])                                           # (TB, H)
    h2 = jnp.tanh(jnp.dot(h1, w2_ref[...], preferred_element_type=jnp.float32)
                  + b2_ref[...])                                           # (TB, H)
    mean_ref[...] = jnp.tanh(
        jnp.dot(h2, w3_ref[...], preferred_element_type=jnp.float32)
        + b3_ref[...])                                                     # (TB, A)


def actor_forward(state, params, *, block_b=512):
    """Pallas implementation of Actor.forward -> (mean, log_std), each (B, A)."""
    w1, b1, w2, b2, w3, b3, log_std = params
    state = state.astype(jnp.float32)
    B, S = state.shape
    H = w1.shape[1]
    A = w3.shape[1]

    # Batch tile: multiple of 8 rows; pad B so the grid divides evenly.
    tb = min(block_b, max(8, B))
    tb = int(np.ceil(tb / 8) * 8)
    Bp = int(np.ceil(B / tb) * tb)
    if Bp != B:
        state_p = jnp.zeros((Bp, S), jnp.float32).at[:B, :].set(state)
    else:
        state_p = state
    grid = (Bp // tb,)

    cost = pl.CostEstimate(
        flops=2 * Bp * (S * H + H * H + H * A),
        transcendentals=Bp * (2 * H + A),
        bytes_accessed=4 * (S * H + H * H + H * A + 2 * H + A + Bp * (S + A)),
    )

    resident = lambda i: (0, 0)   # weights/biases: same block every grid step

    mean_p = pl.pallas_call(
        _actor_kernel,
        out_shape=jax.ShapeDtypeStruct((Bp, A), jnp.float32),
        grid=grid,
        in_specs=[
            pl.BlockSpec((tb, S), lambda i: (i, 0)),   # state, tiled over batch
            pl.BlockSpec((S, H), resident),            # w1
            pl.BlockSpec((1, H), resident),            # b1
            pl.BlockSpec((H, H), resident),            # w2
            pl.BlockSpec((1, H), resident),            # b2
            pl.BlockSpec((H, A), resident),            # w3
            pl.BlockSpec((1, A), resident),            # b3
        ],
        out_specs=pl.BlockSpec((tb, A), lambda i: (i, 0)),
        compiler_params=pltpu.CompilerParams(
            dimension_semantics=("parallel",)),        # megacore-shard batch on v7x
        cost_estimate=cost,
    )(state_p, w1, b1, w2, b2, w3, b3)

    mean = mean_p[:B]
    # log_std is input-independent: clip the scalar, broadcast in the wrapper.
    ls = jnp.clip(log_std[0], -20.0, 2.0)
    log_std_out = jnp.broadcast_to(ls, (B, A)).astype(jnp.float32)
    return mean, log_std_out


def init_params(key, state_dim, action_dim, hidden_dim):
    """Orthogonal weights (std sqrt(2), sqrt(2), 0.01), zero biases, log_std=log(0.5).

    Weights are stored as (in_dim, out_dim) -- transposed vs PyTorch's (out, in).
    """
    k1, k2, k3 = jax.random.split(key, 3)
    ortho = jax.nn.initializers.orthogonal
    w1 = ortho(scale=np.sqrt(2))(k1, (state_dim, hidden_dim), jnp.float32)
    w2 = ortho(scale=np.sqrt(2))(k2, (hidden_dim, hidden_dim), jnp.float32)
    w3 = ortho(scale=0.01)(k3, (hidden_dim, action_dim), jnp.float32)
    b1 = jnp.zeros((1, hidden_dim), jnp.float32)
    b2 = jnp.zeros((1, hidden_dim), jnp.float32)
    b3 = jnp.zeros((1, action_dim), jnp.float32)
    log_std = jnp.full((1,), np.log(0.5), dtype=jnp.float32)
    return (w1, b1, w2, b2, w3, b3, log_std)


def _reference_forward(state, params):
    """Pure-JAX reference for verification."""
    w1, b1, w2, b2, w3, b3, log_std = params
    h1 = jnp.tanh(state @ w1 + b1)
    h2 = jnp.tanh(h1 @ w2 + b2)
    mean = jnp.tanh(h2 @ w3 + b3)
    ls = jnp.clip(log_std[0], -20.0, 2.0)
    return mean, jnp.broadcast_to(ls, mean.shape)


if __name__ == "__main__":
    state_dim, action_dim, hidden_dim, batch = 6, 4, 32, 8

    key = jax.random.PRNGKey(0)
    k_params, k_state = jax.random.split(key)

    params = init_params(k_params, state_dim, action_dim, hidden_dim)
    state = jax.random.normal(k_state, (batch, state_dim), dtype=jnp.float32)

    mean, log_std = actor_forward(state, params)
    mean, log_std = jax.block_until_ready((mean, log_std))

    ref_mean, ref_log_std = _reference_forward(state, params)
    np.testing.assert_allclose(np.asarray(mean), np.asarray(ref_mean),
                               rtol=1e-4, atol=2e-5)
    np.testing.assert_allclose(np.asarray(log_std), np.asarray(ref_log_std),
                               rtol=1e-6, atol=1e-6)

    # Also exercise a larger, non-tile-aligned batch to validate the batch grid path.
    big_state = jax.random.normal(jax.random.PRNGKey(1), (1037, state_dim),
                                  dtype=jnp.float32)
    big_mean, big_log_std = actor_forward(big_state, params)
    big_mean, big_log_std = jax.block_until_ready((big_mean, big_log_std))
    ref_big_mean, ref_big_log_std = _reference_forward(big_state, params)
    np.testing.assert_allclose(np.asarray(big_mean), np.asarray(ref_big_mean),
                               rtol=1e-4, atol=2e-5)
    np.testing.assert_allclose(np.asarray(big_log_std), np.asarray(ref_big_log_std),
                               rtol=1e-6, atol=1e-6)

    # TODO(synk): Actor.get_distribution constructs a torch.distributions.Normal;
    # only the deterministic forward pass (mean, log_std) is implemented as a kernel.
    print("KERNEL_OK")
</pallas_src>

<mosaic_0001>
module attributes {stable_mosaic.version = 11 : i64} {
  func.func @_actor_kernel(%arg0: i32, %arg1: memref<8x6xf32, #tpu.memory_space<vmem>>, %arg2: memref<6x32xf32, #tpu.memory_space<vmem>>, %arg3: memref<1x32xf32, #tpu.memory_space<vmem>>, %arg4: memref<32x32xf32, #tpu.memory_space<vmem>>, %arg5: memref<1x32xf32, #tpu.memory_space<vmem>>, %arg6: memref<32x4xf32, #tpu.memory_space<vmem>>, %arg7: memref<1x4xf32, #tpu.memory_space<vmem>>, %arg8: memref<8x4xf32, #tpu.memory_space<vmem>>) attributes {dimension_semantics = [#tpu.dimension_semantics<parallel>], iteration_bounds = array<i64: 1>, scalar_prefetch = 0 : i64, scratch_operands = 0 : i64, tpu.core_type = #tpu.core_type<tc>, window_params = [{transform_indices = @transform_0, window_bounds = array<i64: 8, 6>}, {pipeline_mode = #tpu.pipeline_mode<synchronous>, transform_indices = @transform_1, window_bounds = array<i64: 6, 32>}, {pipeline_mode = #tpu.pipeline_mode<synchronous>, transform_indices = @transform_2, window_bounds = array<i64: 1, 32>}, {pipeline_mode = #tpu.pipeline_mode<synchronous>, transform_indices = @transform_3, window_bounds = array<i64: 32, 32>}, {pipeline_mode = #tpu.pipeline_mode<synchronous>, transform_indices = @transform_4, window_bounds = array<i64: 1, 32>}, {pipeline_mode = #tpu.pipeline_mode<synchronous>, transform_indices = @transform_5, window_bounds = array<i64: 32, 4>}, {pipeline_mode = #tpu.pipeline_mode<synchronous>, transform_indices = @transform_6, window_bounds = array<i64: 1, 4>}, {transform_indices = @transform_7, window_bounds = array<i64: 8, 4>}]} {
    %c0 = arith.constant 0 : index
    %c0_0 = arith.constant 0 : index
    %0 = vector.load %arg1[%c0, %c0_0] : memref<8x6xf32, #tpu.memory_space<vmem>>, vector<8x6xf32>
    %c0_1 = arith.constant 0 : index
    %c0_2 = arith.constant 0 : index
    %1 = vector.load %arg2[%c0_1, %c0_2] : memref<6x32xf32, #tpu.memory_space<vmem>>, vector<6x32xf32>
    %cst = arith.constant dense<0.000000e+00> : vector<8x32xf32>
    %2 = tpu.matmul %0, %1, %cst {dimension_numbers = #tpu.dot_dimension_numbers<[1], [0], [0], [1], [0, 0, 1, 1], [], []>} : vector<8x6xf32>, vector<6x32xf32>, vector<8x32xf32> -> vector<8x32xf32>
    %c0_3 = arith.constant 0 : index
    %c0_4 = arith.constant 0 : index
    %3 = vector.load %arg3[%c0_3, %c0_4] : memref<1x32xf32, #tpu.memory_space<vmem>>, vector<1x32xf32>
    %4 = vector.broadcast %3 : vector<1x32xf32> to vector<8x32xf32>
    %5 = arith.addf %2, %4 : vector<8x32xf32>
    %6 = math.tanh %5 : vector<8x32xf32>
    %c0_5 = arith.constant 0 : index
    %c0_6 = arith.constant 0 : index
    %7 = vector.load %arg4[%c0_5, %c0_6] : memref<32x32xf32, #tpu.memory_space<vmem>>, vector<32x32xf32>
    %cst_7 = arith.constant dense<0.000000e+00> : vector<8x32xf32>
    %8 = tpu.matmul %6, %7, %cst_7 {dimension_numbers = #tpu.dot_dimension_numbers<[1], [0], [0], [1], [0, 0, 1, 1], [], []>} : vector<8x32xf32>, vector<32x32xf32>, vector<8x32xf32> -> vector<8x32xf32>
    %c0_8 = arith.constant 0 : index
    %c0_9 = arith.constant 0 : index
    %9 = vector.load %arg5[%c0_8, %c0_9] : memref<1x32xf32, #tpu.memory_space<vmem>>, vector<1x32xf32>
    %10 = vector.broadcast %9 : vector<1x32xf32> to vector<8x32xf32>
    %11 = arith.addf %8, %10 : vector<8x32xf32>
    %12 = math.tanh %11 : vector<8x32xf32>
    %c0_10 = arith.constant 0 : index
    %c0_11 = arith.constant 0 : index
    %13 = vector.load %arg6[%c0_10, %c0_11] : memref<32x4xf32, #tpu.memory_space<vmem>>, vector<32x4xf32>
    %cst_12 = arith.constant dense<0.000000e+00> : vector<8x4xf32>
    %14 = tpu.matmul %12, %13, %cst_12 {dimension_numbers = #tpu.dot_dimension_numbers<[1], [0], [0], [1], [0, 0, 1, 1], [], []>} : vector<8x32xf32>, vector<32x4xf32>, vector<8x4xf32> -> vector<8x4xf32>
    %c0_13 = arith.constant 0 : index
    %c0_14 = arith.constant 0 : index
    %15 = vector.load %arg7[%c0_13, %c0_14] : memref<1x4xf32, #tpu.memory_space<vmem>>, vector<1x4xf32>
    %16 = vector.broadcast %15 : vector<1x4xf32> to vector<8x4xf32>
    %17 = arith.addf %14, %16 : vector<8x4xf32>
    %18 = math.tanh %17 : vector<8x4xf32>
    %c0_15 = arith.constant 0 : index
    %c0_16 = arith.constant 0 : index
    %19 = vector.load %arg8[%c0_15, %c0_16] : memref<8x4xf32, #tpu.memory_space<vmem>>, vector<8x4xf32>
    tpu.vector_store %arg8[%c0_15, %c0_16], %18 {strides = array<i32>} : memref<8x4xf32, #tpu.memory_space<vmem>>, vector<8x4xf32>,
    return
  }
  func.func @transform_0(%arg0: i32) -> (i32, i32) {
    %c0_i32 = arith.constant 0 : i32
    %c0_i32_0 = arith.constant 0 : i32
    return %arg0, %c0_i32 : i32, i32
  }
  func.func @transform_1(%arg0: i32) -> (i32, i32) {
    %c0_i32 = arith.constant 0 : i32
    %c0_i32_0 = arith.constant 0 : i32
    %c0_i32_1 = arith.constant 0 : i32
    return %c0_i32, %c0_i32_0 : i32, i32
  }
  func.func @transform_2(%arg0: i32) -> (i32, i32) {
    %c0_i32 = arith.constant 0 : i32
    %c0_i32_0 = arith.constant 0 : i32
    %c0_i32_1 = arith.constant 0 : i32
    return %c0_i32, %c0_i32_0 : i32, i32
  }
  func.func @transform_3(%arg0: i32) -> (i32, i32) {
    %c0_i32 = arith.constant 0 : i32
    %c0_i32_0 = arith.constant 0 : i32
    %c0_i32_1 = arith.constant 0 : i32
    return %c0_i32, %c0_i32_0 : i32, i32
  }
  func.func @transform_4(%arg0: i32) -> (i32, i32) {
    %c0_i32 = arith.constant 0 : i32
    %c0_i32_0 = arith.constant 0 : i32
    %c0_i32_1 = arith.constant 0 : i32
    return %c0_i32, %c0_i32_0 : i32, i32
  }
  func.func @transform_5(%arg0: i32) -> (i32, i32) {
    %c0_i32 = arith.constant 0 : i32
    %c0_i32_0 = arith.constant 0 : i32
    %c0_i32_1 = arith.constant 0 : i32
    return %c0_i32, %c0_i32_0 : i32, i32
  }
  func.func @transform_6(%arg0: i32) -> (i32, i32) {
    %c0_i32 = arith.constant 0 : i32
    %c0_i32_0 = arith.constant 0 : i32
    %c0_i32_1 = arith.constant 0 : i32
    return %c0_i32, %c0_i32_0 : i32, i32
  }
  func.func @transform_7(%arg0: i32) -> (i32, i32) {
    %c0_i32 = arith.constant 0 : i32
    %c0_i32_0 = arith.constant 0 : i32
    return %arg0, %c0_i32 : i32, i32
  }
}

</mosaic_0001>

<llo_original>
// kernel: tpu_custom_call.1
$region0: #{tpu_custom_call.1}
  #allocation0 [shape = 'u32[]', space=smem, size = 0x4, offset = 0x4, fixed_abs, tag = 'smem constant byte address 0x4 - core index']
  #allocation1 [shape = 'u32[144,128]{1,0:T(1,128)}', space=vmem, size = 0x12000, scoped, tag = 'internal scratch']
  %s0 = inlined_call_operand.vmem [shape: f32[8,6], index: 0, kind: input, shape index: {}]
  %s1 = inlined_call_operand.hbm [shape: f32[6,32], index: 1, kind: input, shape index: {}]
  %s2 = inlined_call_operand.vmem [shape: f32[1,32], index: 2, kind: input, shape index: {}]
  %s3 = inlined_call_operand.vmem [shape: f32[32,32], index: 3, kind: input, shape index: {}]
  %s4 = inlined_call_operand.vmem [shape: f32[1,32], index: 4, kind: input, shape index: {}]
  %s5 = inlined_call_operand.vmem [shape: f32[32,4], index: 5, kind: input, shape index: {}]
  %s6 = inlined_call_operand.vmem [shape: f32[1,4], index: 6, kind: input, shape index: {}]
  %s7 = inlined_call_operand.vmem [shape: f32[8,4], index: 7, kind: output, shape index: {}]
  %s8 = sld [smem:[#allocation0]]
  $region42: #{tpu_custom_call.1} parent=0
    _
  %s10 = ssub.s32 1, %s8
  %s11 = scalar_select 0, %s10, %s8
  $region1: #{tpu_custom_call.1} parent=0
    #allocation2 [shape = 'u8[4096]{0}', space=vmem, size = 0x1000, scoped, tag = 'input window, operand 1, single buffered']
    #allocation3 [shape = 's32[1]{0}', space=sflag, size = 0x4, scoped, tag = 'scoped memory for tpu_custom_call.1']
    %12 = vsyncpa [#allocation3], 0
    // Predicated region
    $region2: #{tpu_custom_call.1} parent=1 // pred_check
      _
    $region3: #{tpu_custom_call.1} parent=1 // pred_check_branch
      %14 = sbr.rel (0) target = $region5
    $region4: #{tpu_custom_call.1} parent=1 // pred_region
      _
    $region5: #{tpu_custom_call.1} parent=1 // pred_fallthru
      _
    // Predicated region
    $region6: #{tpu_custom_call.1} parent=1 // pred_check
      _
    $region7: #{tpu_custom_call.1} parent=1 // pred_check_branch
      %16 = sbr.rel (0) target = $region9
    $region8: #{tpu_custom_call.1} parent=1 // pred_region
      %s18 = ssub.s32 128, 128
      %19 = vsyncadd [#allocation3], %s18
      %s21 = sshll.u32 [#allocation2], 4
      %s22 = int_to_ptr.vmem [resolvable:$true] %s21
      %24 = dma.hbm_to_vmem [thread:$0]  %s1, 128, %s22, [#allocation3]
    $region9: #{tpu_custom_call.1} parent=1 // pred_fallthru
      _
    // Predicated region
    $region10: #{tpu_custom_call.1} parent=1 // pred_check
      _
    $region11: #{tpu_custom_call.1} parent=1 // pred_check_branch
      %26 = sbr.rel (0) target = $region13
    $region12: #{tpu_custom_call.1} parent=1 // pred_region
      _
    $region13: #{tpu_custom_call.1} parent=1 // pred_fallthru
      _
    // Predicated region
    $region14: #{tpu_custom_call.1} parent=1 // pred_check
      _
    $region15: #{tpu_custom_call.1} parent=1 // pred_check_branch
      %28 = sbr.rel (0) target = $region17
    $region16: #{tpu_custom_call.1} parent=1 // pred_region
      _
    $region17: #{tpu_custom_call.1} parent=1 // pred_fallthru
      _
    // Predicated region
    $region18: #{tpu_custom_call.1} parent=1 // pred_check
      _
    $region19: #{tpu_custom_call.1} parent=1 // pred_check_branch
      %30 = sbr.rel (0) target = $region21
    $region20: #{tpu_custom_call.1} parent=1 // pred_region
      _
    $region21: #{tpu_custom_call.1} parent=1 // pred_fallthru
      _
    // Predicated region
    $region22: #{tpu_custom_call.1} parent=1 // pred_check
      _
    $region23: #{tpu_custom_call.1} parent=1 // pred_check_branch
      %32 = sbr.rel (0) target = $region25
    $region24: #{tpu_custom_call.1} parent=1 // pred_region
      _
    $region25: #{tpu_custom_call.1} parent=1 // pred_fallthru
      _
    // Predicated region
    $region26: #{tpu_custom_call.1} parent=1 // pred_check
      _
    $region27: #{tpu_custom_call.1} parent=1 // pred_check_branch
      %34 = sbr.rel (0) target = $region29
    $region28: #{tpu_custom_call.1} parent=1 // pred_region
      _
    $region29: #{tpu_custom_call.1} parent=1 // pred_fallthru
      _
    // Predicated region
    $region30: #{tpu_custom_call.1} parent=1 // pred_check
      _
    $region31: #{tpu_custom_call.1} parent=1 // pred_check_branch
      %36 = sbr.rel (0) target = $region33
    $region32: #{tpu_custom_call.1} parent=1 // pred_region
      %37 = dma.done [#allocation3], 128
    $region33: #{tpu_custom_call.1} parent=1 // pred_fallthru
      _
    %v38 = vld [vmem:[%s0] sm:$0xff]
    %v39 = vld [vmem:[#allocation2] sm:$0x3f]
    %v40 = vld [vmem:[%s2] sm:$0x1]
    %v42 = vlaneseq
    %v43 = vshrl.u32 %v42, 7
    %v44 = vsub.s32 0, %v43
    %v45 = vrot.slane %v40, %v44
    %vm47 = vcmask 48128
    %v49 = vsel %vm47, %v38, 0
    %vm51 = vcmask 1045504
    %v53 = vsel %vm51, %v39, 0
    %55 = vmatprep.subr.mxu0 0.0
    %56 = vmatpush1.msra.mxu0 %v53
    %57 = vmatprep.subr.mxu0 0.0
    %58 = vmatpush1.msra.mxu0 0.0
    %59 = vmatprep.subr.mxu0 0.0
    %60 = vmatpush1.msra.mxu0 0.0
    %61 = vmatprep.subr.mxu0 0.0
    %62 = vmatpush1.msra.mxu0 0.0
    %63 = vmatprep.subr.mxu0 0.0
    %64 = vmatpush1.msra.mxu0 0.0
    %65 = vmatprep.subr.mxu0 0.0
    %66 = vmatpush1.msra.mxu0 0.0
    %67 = vmatprep.subr.mxu0 0.0
    %68 = vmatpush1.msra.mxu0 0.0
    %69 = vmatprep.subr.mxu0 0.0
    %70 = vmatpush1.msra.mxu0 0.0
    %71 = vmatprep.subr.mxu0 0.0
    %72 = vmatpush1.msra.mxu0 0.0
    %73 = vmatprep.subr.mxu0 0.0
    %74 = vmatpush1.msra.mxu0 0.0
    %75 = vmatprep.subr.mxu0 0.0
    %76 = vmatpush1.msra.mxu0 0.0
    %77 = vmatprep.subr.mxu0 0.0
    %78 = vmatpush1.msra.mxu0 0.0
    %79 = vmatprep.subr.mxu0 0.0
    %80 = vmatpush1.msra.mxu0 0.0
    %81 = vmatprep.subr.mxu0 0.0
    %82 = vmatpush1.msra.mxu0 0.0
    %83 = vmatprep.subr.mxu0 0.0
    %84 = vmatpush1.msra.mxu0 0.0
    %85 = vmatprep.subr.mxu0 0.0
    %86 = vmatpush1.msra.mxu0 0.0
    %87 = vmatprep.subr.mxu0 0.0
    %88 = vmatpush1.msra.mxu0 0.0
    %89 = vmatprep.subr.mxu0 0.0
    %90 = vmatpush1.msra.mxu0 0.0
    %91 = vmatprep.subr.mxu0 0.0
    %92 = vmatpush1.msra.mxu0 0.0
    %93 = vmatprep.subr.mxu0 0.0
    %94 = vmatpush1.msra.mxu0 0.0
    %95 = vmatprep.subr.mxu0 0.0
    %96 = vmatpush1.msra.mxu0 0.0
    %97 = vmatprep.subr.mxu0 0.0
    %98 = vmatpush1.msra.mxu0 0.0
    %99 = vmatprep.subr.mxu0 0.0
    %100 = vmatpush1.msra.mxu0 0.0
    %101 = vmatprep.subr.mxu0 0.0
    %102 = vmatpush1.msra.mxu0 0.0
    %103 = vmatprep.subr.mxu0 0.0
    %104 = vmatpush1.msra.mxu0 0.0
    %105 = vmatprep.subr.mxu0 0.0
    %106 = vmatpush1.msra.mxu0 0.0
    %107 = vmatprep.subr.mxu0 0.0
    %108 = vmatpush1.msra.mxu0 0.0
    %109 = vmatprep.subr.mxu0 0.0
    %110 = vmatpush1.msra.mxu0 0.0
    %111 = vmatprep.subr.mxu0 0.0
    %112 = vmatpush1.msra.mxu0 0.0
    %113 = vmatprep.subr.mxu0 0.0
    %114 = vmatpush1.msra.mxu0 0.0
    %115 = vmatprep.subr.mxu0 0.0
    %116 = vmatpush1.msra.mxu0 0.0
    %117 = vmatprep.subr.mxu0 0.0
    %118 = vmatpush1.msra.mxu0 0.0
    %119 = vmatprep.mubr.f32.mxu0 0.0
    %120 = vmatmul.mubr.f32.gmra.mrb[0].mxu0 %v49
    %v121 = vpop.f32.mrb[0].mxu0
    %v122 = vadd.f32 %v45, %v121
    %v123 = vpop.f32.mrb[0].mxu0
    %124 = vdwg.mxu0
    %v125 = vtanh.pop %v122
    %v126 = vld [vmem:[%s3] sm:$0xff]
    %v127 = vld [vmem:[%s3 + $0x8] sm:$0xff]
    %v128 = vld [vmem:[%s3 + $0x10] sm:$0xff]
    %v129 = vld [vmem:[%s3 + $0x18] sm:$0xff]
    %v130 = vld [vmem:[%s4] sm:$0x1]
    %v132 = vlaneseq
    %v133 = vshrl.u32 %v132, 7
    %v134 = vsub.s32 0, %v133
    %v135 = vrot.slane %v130, %v134
    %vm137 = vcmask 261120
    %v139 = vsel %vm137, %v125, 0
    %141 = vmatprep.subr.mxu0 0.0
    %142 = vmatpush1.msra.mxu0 %v126
    %143 = vmatprep.subr.mxu0 0.0
    %144 = vmatpush1.msra.mxu0 %v127
    %145 = vmatprep.subr.mxu0 0.0
    %146 = vmatpush1.msra.mxu0 %v128
    %147 = vmatprep.subr.mxu0 0.0
    %148 = vmatpush1.msra.mxu0 %v129
    %149 = vmatprep.subr.mxu0 0.0
    %150 = vmatpush1.msra.mxu0 0.0
    %151 = vmatprep.subr.mxu0 0.0
    %152 = vmatpush1.msra.mxu0 0.0
    %153 = vmatprep.subr.mxu0 0.0
    %154 = vmatpush1.msra.mxu0 0.0
    %155 = vmatprep.subr.mxu0 0.0
    %156 = vmatpush1.msra.mxu0 0.0
    %157 = vmatprep.subr.mxu0 0.0
    %158 = vmatpush1.msra.mxu0 0.0
    %159 = vmatprep.subr.mxu0 0.0
    %160 = vmatpush1.msra.mxu0 0.0
    %161 = vmatprep.subr.mxu0 0.0
    %162 = vmatpush1.msra.mxu0 0.0
    %163 = vmatprep.subr.mxu0 0.0
    %164 = vmatpush1.msra.mxu0 0.0
    %165 = vmatprep.subr.mxu0 0.0
    %166 = vmatpush1.msra.mxu0 0.0
    %167 = vmatprep.subr.mxu0 0.0
    %168 = vmatpush1.msra.mxu0 0.0
    %169 = vmatprep.subr.mxu0 0.0
    %170 = vmatpush1.msra.mxu0 0.0
    %171 = vmatprep.subr.mxu0 0.0
    %172 = vmatpush1.msra.mxu0 0.0
    %173 = vmatprep.subr.mxu0 0.0
    %174 = vmatpush1.msra.mxu0 0.0
    %175 = vmatprep.subr.mxu0 0.0
    %176 = vmatpush1.msra.mxu0 0.0
    %177 = vmatprep.subr.mxu0 0.0
    %178 = vmatpush1.msra.mxu0 0.0
    %179 = vmatprep.subr.mxu0 0.0
    %180 = vmatpush1.msra.mxu0 0.0
    %181 = vmatprep.subr.mxu0 0.0
    %182 = vmatpush1.msra.mxu0 0.0
    %183 = vmatprep.subr.mxu0 0.0
    %184 = vmatpush1.msra.mxu0 0.0
    %185 = vmatprep.subr.mxu0 0.0
    %186 = vmatpush1.msra.mxu0 0.0
    %187 = vmatprep.subr.mxu0 0.0
    %188 = vmatpush1.msra.mxu0 0.0
    %189 = vmatprep.subr.mxu0 0.0
    %190 = vmatpush1.msra.mxu0 0.0
    %191 = vmatprep.subr.mxu0 0.0
    %192 = vmatpush1.msra.mxu0 0.0
    %193 = vmatprep.subr.mxu0 0.0
    %194 = vmatpush1.msra.mxu0 0.0
    %195 = vmatprep.subr.mxu0 0.0
    %196 = vmatpush1.msra.mxu0 0.0
    %197 = vmatprep.subr.mxu0 0.0
    %198 = vmatpush1.msra.mxu0 0.0
    %199 = vmatprep.subr.mxu0 0.0
    %200 = vmatpush1.msra.mxu0 0.0
    %201 = vmatprep.subr.mxu0 0.0
    %202 = vmatpush1.msra.mxu0 0.0
    %203 = vmatprep.subr.mxu0 0.0
    %204 = vmatpush1.msra.mxu0 0.0
    %205 = vmatprep.mubr.f32.mxu0 0.0
    %206 = vmatmul.mubr.f32.gmra.mrb[0].mxu0 %v139
    %v207 = vpop.f32.mrb[0].mxu0
    %v208 = vadd.f32 %v135, %v207
    %v209 = vpop.f32.mrb[0].mxu0
    %210 = vdwg.mxu0
    %v211 = vtanh.pop %v208
    %v212 = vld [vmem:[%s5] sm:$0xff]
    %v213 = vld [vmem:[%s5 + $0x8] sm:$0xff]
    %v214 = vld [vmem:[%s5 + $0x10] sm:$0xff]
    %v215 = vld [vmem:[%s5 + $0x18] sm:$0xff]
    %v216 = vld [vmem:[%s6] sm:$0x1]
    %v218 = vlaneseq
    %v219 = vshrl.u32 %v218, 7
    %v220 = vsub.s32 0, %v219
    %v221 = vrot.slane %v216, %v220
    %v224 = vsel %vm137, %v211, 0
    %226 = vmatprep.subr.mxu0 0.0
    %227 = vmatpush1.msra.mxu0 %v212
    %228 = vmatprep.subr.mxu0 0.0
    %229 = vmatpush1.msra.mxu0 %v213
    %230 = vmatprep.subr.mxu0 0.0
    %231 = vmatpush1.msra.mxu0 %v214
    %232 = vmatprep.subr.mxu0 0.0
    %233 = vmatpush1.msra.mxu0 %v215
    %234 = vmatprep.subr.mxu0 0.0
    %235 = vmatpush1.msra.mxu0 0.0
    %236 = vmatprep.subr.mxu0 0.0
    %237 = vmatpush1.msra.mxu0 0.0
    %238 = vmatprep.subr.mxu0 0.0
    %239 = vmatpush1.msra.mxu0 0.0
    %240 = vmatprep.subr.mxu0 0.0
    %241 = vmatpush1.msra.mxu0 0.0
    %242 = vmatprep.subr.mxu0 0.0
    %243 = vmatpush1.msra.mxu0 0.0
    %244 = vmatprep.subr.mxu0 0.0
    %245 = vmatpush1.msra.mxu0 0.0
    %246 = vmatprep.subr.mxu0 0.0
    %247 = vmatpush1.msra.mxu0 0.0
    %248 = vmatprep.subr.mxu0 0.0
    %249 = vmatpush1.msra.mxu0 0.0
    %250 = vmatprep.subr.mxu0 0.0
    %251 = vmatpush1.msra.mxu0 0.0
    %252 = vmatprep.subr.mxu0 0.0
    %253 = vmatpush1.msra.mxu0 0.0
    %254 = vmatprep.subr.mxu0 0.0
    %255 = vmatpush1.msra.mxu0 0.0
    %256 = vmatprep.subr.mxu0 0.0
    %257 = vmatpush1.msra.mxu0 0.0
    %258 = vmatprep.subr.mxu0 0.0
    %259 = vmatpush1.msra.mxu0 0.0
    %260 = vmatprep.subr.mxu0 0.0
    %261 = vmatpush1.msra.mxu0 0.0
    %262 = vmatprep.subr.mxu0 0.0
    %263 = vmatpush1.msra.mxu0 0.0
    %264 = vmatprep.subr.mxu0 0.0
    %265 = vmatpush1.msra.mxu0 0.0
    %266 = vmatprep.subr.mxu0 0.0
    %267 = vmatpush1.msra.mxu0 0.0
    %268 = vmatprep.subr.mxu0 0.0
    %269 = vmatpush1.msra.mxu0 0.0
    %270 = vmatprep.subr.mxu0 0.0
    %271 = vmatpush1.msra.mxu0 0.0
    %272 = vmatprep.subr.mxu0 0.0
    %273 = vmatpush1.msra.mxu0 0.0
    %274 = vmatprep.subr.mxu0 0.0
    %275 = vmatpush1.msra.mxu0 0.0
    %276 = vmatprep.subr.mxu0 0.0
    %277 = vmatpush1.msra.mxu0 0.0
    %278 = vmatprep.subr.mxu0 0.0
    %279 = vmatpush1.msra.mxu0 0.0
    %280 = vmatprep.subr.mxu0 0.0
    %281 = vmatpush1.msra.mxu0 0.0
    %282 = vmatprep.subr.mxu0 0.0
    %283 = vmatpush1.msra.mxu0 0.0
    %284 = vmatprep.subr.mxu0 0.0
    %285 = vmatpush1.msra.mxu0 0.0
    %286 = vmatprep.subr.mxu0 0.0
    %287 = vmatpush1.msra.mxu0 0.0
    %288 = vmatprep.subr.mxu0 0.0
    %289 = vmatpush1.msra.mxu0 0.0
    %290 = vmatprep.mubr.f32.mxu0 0.0
    %291 = vmatmul.mubr.f32.gmra.mrb[0].mxu0 %v224
    %v292 = vpop.f32.mrb[0].mxu0
    %v293 = vadd.f32 %v221, %v292
    %v294 = vpop.f32.mrb[0].mxu0
    %295 = vdwg.mxu0
    %v296 = vtanh.pop %v293
    %vm297 = vcmask 31744
    %298 = vst.msk [vmem:[%s7] sm:$0xff] %vm297, %v296
    // Predicated region
    $region34: #{tpu_custom_call.1} parent=1 // pred_check
      _
    $region35: #{tpu_custom_call.1} parent=1 // pred_check_branch
      %300 = sbr.rel (0) target = $region37
    $region36: #{tpu_custom_call.1} parent=1 // pred_region
      _
    $region37: #{tpu_custom_call.1} parent=1 // pred_fallthru
      _
    // Predicated region
    $region38: #{tpu_custom_call.1} parent=1 // pred_check
      _
    $region39: #{tpu_custom_call.1} parent=1 // pred_check_branch
      %302 = sbr.rel (0) target = $region41
    $region40: #{tpu_custom_call.1} parent=1 // pred_region
      _
    $region41: #{tpu_custom_call.1} parent=1 // pred_fallthru
      _
    %303 = vsyncpa [#allocation3], 1

</llo_original>
